<compile_context>
chip_gen: v7x
topology: tpu7x:2x2x1
jax: 0.10.0
libtpu: 0.0.40
codegen_flags: <defaults>
</compile_context>

<pallas_src>
from functools import partial

import jax
import jax.numpy as jnp
import numpy as np
from jax.experimental import pallas as pl
from jax.experimental.pallas import tpu as pltpu

# Problem sizes (small, consistent with an image-like NCHW input).
N, CIN, H, W = 2, 4, 16, 16
CHID = 16
COUT = 4
KH = KW = 3


def hypernet_kernel(x_ref, w1_ref, b1_ref, w2_ref, b2_ref, out_ref, *, h):
    """conv3x3(pad=1) -> tanh -> conv3x3(pad=1) on lane-dense 2-D slabs.

    x_ref  : [N*H, W*CIN]        row = n*H + y, lane = x*CIN + ci   (f32)
    w1_ref : [3, W*CIN, W*CHID]  block-tridiagonal slab per dy       (bf16)
    b1_ref : [1, W*CHID]         bias tiled along x                  (f32)
    w2_ref : [3*W*CHID, W*COUT]  dy slabs stacked along K            (bf16)
    b2_ref : [1, W*COUT]                                              (f32)
    out_ref: [N*H, W*COUT]       row = n*H + y, lane = x*COUT + co
    """
    nh = x_ref.shape[0]

    # Row masks for the vertical zero padding (and the per-image block
    # boundary inside the N*H row stack): y == 0 rows have nothing above,
    # y == h-1 rows have nothing below.
    y = jax.lax.broadcasted_iota(jnp.int32, (nh, 1), 0) % h
    not_top = y > 0
    not_bot = y < h - 1

    def vshift(v):
        # dn[r] = v[r-1], up[r] = v[r+1] (jnp.roll semantics); XLU roll + VPU
        # mask — no MXU work, no padded scratch, no masked activation stores.
        dn = jnp.where(not_top, pltpu.roll(v, shift=1, axis=0), 0.0)
        up = jnp.where(not_bot, pltpu.roll(v, shift=nh - 1, axis=0), 0.0)
        return dn, up

    # --- layer 1: conv3x3 + bias + tanh ----------------------------------
    x = x_ref[...]
    dn, up = vshift(x)
    # 3-dot accumulation chain; the 64-lane K blocks are not 128-aligned, so
    # K-concatenation here would either cost lane shifts or (if zero-padded to
    # 128) double the DMA-dominant weight slab — not worth it.
    h1 = jnp.dot(dn, w1_ref[0], preferred_element_type=jnp.float32)
    h1 += jnp.dot(x, w1_ref[1], preferred_element_type=jnp.float32)
    h1 += jnp.dot(up, w1_ref[2], preferred_element_type=jnp.float32)
    hid = jnp.tanh(h1 + b1_ref[...])                     # EUP tanh, [32, 256]

    # --- layer 2: conv3x3 + bias, fused over dy ---------------------------
    dn_h, up_h = vshift(hid)
    # 256-lane pieces are vreg-aligned -> concat is free vreg placement; one
    # [32,768]@[768,64] matmul replaces 3 MRF push/drain rounds + 2 VPU adds.
    lhs = jnp.concatenate([dn_h, hid, up_h], axis=-1)    # [32, 768]
    out = jnp.dot(lhs, w2_ref[...], preferred_element_type=jnp.float32)
    # NOTE: output slab is [32, 64] (< 128 lanes -> masked stores); acceptable
    # at 8 KiB of output, revisit if batch/M grows.
    out_ref[...] = (out + b2_ref[...]).astype(out_ref.dtype)


def vanilla_hypernet_forward(t, x_nchw, params):
    """Pallas equivalent of VanillaHyperNet.forward(t, x) = net(x)."""
    del t  # `t` is ignored by VanillaHyperNet.forward
    w1s, b1l, w2s, b2l = params
    n, cin, h, w = x_nchw.shape
    cout = b2l.shape[-1] // w

    # NCHW -> lane-dense [N*H, W*CIN] (channels interleaved on the lane dim).
    # TODO(synk): inside an ODE/hypersolver loop the state should stay in this
    # slab layout across repeated net(x) calls, and the constant weight slabs
    # should stay VMEM-resident (step-grid with a constant weight index_map or
    # cross-call prefetch); per-call, these boundary transposes + the weight
    # DMA dominate the ~8 ns of MXU work.
    x2d = jnp.transpose(x_nchw, (0, 2, 3, 1)).reshape(n * h, w * cin)
    x2d = x2d.astype(jnp.float32)

    vmem = pl.BlockSpec(memory_space=pltpu.MemorySpace.VMEM)
    out2d = pl.pallas_call(
        partial(hypernet_kernel, h=h),
        out_shape=jax.ShapeDtypeStruct((n * h, w * cout), jnp.float32),
        in_specs=[vmem] * 5,
        out_specs=vmem,
        # Whole problem (~0.2 MiB) fits in scoped VMEM on every generation; a
        # grid at this size is pure per-step overhead.  With a real batch, add
        # a leading grid axis over N*H tiles (weights index-mapped to the same
        # block so they stay resident), dimension_semantics=("parallel",), to
        # use both TensorCores on v7x and grow M toward 256 on v6e.
    )(x2d, w1s, b1l, w2s, b2l)

    # [N*H, W*COUT] -> NCHW to match the PyTorch output convention.
    return out2d.reshape(n, h, w, cout).transpose(0, 3, 1, 2)


def _conv_slabs(w_oihw, width):
    """Fold a 3x3 conv's horizontal taps + x zero-padding into three
    block-tridiagonal [width*Cin, width*Cout] matrices (one per dy)."""
    w_np = np.asarray(w_oihw, np.float32)          # [Cout, Cin, KH, KW]
    cout, cin = w_np.shape[0], w_np.shape[1]
    slabs = np.zeros((3, width * cin, width * cout), np.float32)
    for idy in range(3):                           # dy = idy - 1
        for idx in range(3):                       # dx = idx - 1
            dx = idx - 1
            blk = w_np[:, :, idy, idx].T           # [Cin, Cout]
            for xo in range(width):
                xi = xo + dx
                if 0 <= xi < width:                # out-of-range == zero pad
                    slabs[idy, xi * cin:(xi + 1) * cin,
                          xo * cout:(xo + 1) * cout] = blk
    return slabs


def make_params(key, minval, maxval):
    k1, k2, k3, k4 = jax.random.split(key, 4)
    # PyTorch Conv2d layouts: weight [Cout, Cin, KH, KW], bias [Cout].
    w1_t = jax.random.uniform(k1, (CHID, CIN, KH, KW), jnp.float32, minval, maxval)
    b1 = jax.random.uniform(k2, (CHID,), jnp.float32, minval, maxval)
    w2_t = jax.random.uniform(k3, (COUT, CHID, KH, KW), jnp.float32, minval, maxval)
    b2 = jax.random.uniform(k4, (COUT,), jnp.float32, minval, maxval)

    # Weight slabs in bf16 (halves the dominant HBM traffic); biases in f32.
    w1s = jnp.asarray(_conv_slabs(w1_t, W), jnp.bfloat16)              # [3,64,256]
    w2s = jnp.asarray(_conv_slabs(w2_t, W).reshape(3 * W * CHID, W * COUT),
                      jnp.bfloat16)                                     # [768,64]
    params = (w1s, jnp.tile(b1, W).reshape(1, W * CHID),
              w2s, jnp.tile(b2, W).reshape(1, W * COUT))
    torch_layout = (w1_t, b1, w2_t, b2)
    return params, torch_layout


def init_params(key):
    """torch.nn.init.uniform_(p, 0, 1e-5) for every parameter of `net`."""
    return make_params(key, 0.0, 1e-5)


def reference_forward(x_nchw, torch_layout):
    """Pure-JAX reference of net(x) (same semantics as the PyTorch module)."""
    w1_t, b1, w2_t, b2 = torch_layout
    y = jax.lax.conv_general_dilated(
        x_nchw, w1_t, window_strides=(1, 1), padding=((1, 1), (1, 1)),
        dimension_numbers=("NCHW", "OIHW", "NCHW"))
    y = jnp.tanh(y + b1.reshape(1, -1, 1, 1))
    y = jax.lax.conv_general_dilated(
        y, w2_t, window_strides=(1, 1), padding=((1, 1), (1, 1)),
        dimension_numbers=("NCHW", "OIHW", "NCHW"))
    return y + b2.reshape(1, -1, 1, 1)


def _bf16_round(w):
    return w.astype(jnp.bfloat16).astype(jnp.float32)


if __name__ == "__main__":
    key = jax.random.PRNGKey(0)
    kx, kp, ks = jax.random.split(key, 3)

    x = jax.random.normal(kx, (N, CIN, H, W), jnp.float32)   # NCHW, like PyTorch
    t = jnp.float32(0.0)                                     # ignored by forward

    fwd = jax.jit(vanilla_hypernet_forward)

    # Module-faithful run: uniform(0, 1e-5) init, exactly like VanillaHyperNet.
    # Tolerance accounts for the bf16 weight-slab storage and differing
    # contraction order vs the XLA conv reference (outputs are ~1e-5 scale and
    # bias-dominated; observed/estimated deltas are O(1e-9)).
    params, torch_layout = init_params(kp)
    out = jax.block_until_ready(fwd(t, x, params))
    ref = jax.block_until_ready(reference_forward(x, torch_layout))
    np.testing.assert_allclose(np.asarray(out), np.asarray(ref),
                               rtol=1e-3, atol=1e-8)

    # Extra structure check with O(1) weights: exercises the conv/slab/shift
    # plumbing much harder than the bias-dominated 1e-5 init.  The reference
    # uses the same bf16-rounded weights as the kernel slabs, so remaining
    # differences are only matmul pass precision / contraction order.
    params_s, (w1_s, b1_s, w2_s, b2_s) = make_params(ks, -1.0, 1.0)
    out_s = jax.block_until_ready(fwd(t, x, params_s))
    ref_s = jax.block_until_ready(
        reference_forward(x, (_bf16_round(w1_s), b1_s, _bf16_round(w2_s), b2_s)))
    np.testing.assert_allclose(np.asarray(out_s), np.asarray(ref_s),
                               rtol=2e-2, atol=1e-1)

    print("KERNEL_OK")
</pallas_src>

<mosaic_0001>
module attributes {stable_mosaic.version = 11 : i64} {
  func.func @hypernet_kernel(%arg0: memref<32x64xf32, #tpu.memory_space<vmem>>, %arg1: memref<3x64x256xbf16, #tpu.memory_space<vmem>>, %arg2: memref<1x256xf32, #tpu.memory_space<vmem>>, %arg3: memref<768x64xbf16, #tpu.memory_space<vmem>>, %arg4: memref<1x64xf32, #tpu.memory_space<vmem>>, %arg5: memref<32x64xf32, #tpu.memory_space<vmem>>) attributes {dimension_semantics = [], scalar_prefetch = 0 : i64, scratch_operands = 0 : i64, tpu.core_type = #tpu.core_type<tc>} {
    %0 = tpu.iota {dimensions = array<i32: 0>} : vector<32x1xi32>
    %c16_i32 = arith.constant 16 : i32
    %c0_i32 = arith.constant 0 : i32
    %1 = arith.cmpi eq, %c16_i32, %c0_i32 : i32
    %c1_i32 = arith.constant 1 : i32
    %2 = arith.select %1, %c1_i32, %c16_i32 : i32
    %3 = vector.broadcast %2 : i32 to vector<32x1xi32>
    %4 = arith.remsi %0, %3 : vector<32x1xi32>
    %c0_i32_0 = arith.constant 0 : i32
    %5 = vector.broadcast %c0_i32_0 : i32 to vector<32x1xi32>
    %6 = arith.cmpi ne, %4, %5 : vector<32x1xi32>
    %c0_i32_1 = arith.constant 0 : i32
    %7 = vector.broadcast %c0_i32_1 : i32 to vector<32x1xi32>
    %8 = arith.cmpi slt, %4, %7 : vector<32x1xi32>
    %c0_i32_2 = arith.constant 0 : i32
    %9 = arith.cmpi slt, %2, %c0_i32_2 : i32
    %10 = vector.broadcast %9 : i1 to vector<32x1xi1>
    %11 = vector.broadcast %10 : vector<32x1xi1> to vector<32x1xi1>
    %12 = arith.xori %8, %11 : vector<32x1xi1>
    %13 = arith.andi %12, %6 : vector<32x1xi1>
    %14 = vector.broadcast %2 : i32 to vector<32x1xi32>
    %15 = arith.addi %4, %14 : vector<32x1xi32>
    %16 = arith.select %13, %15, %4 : vector<32x1xi1>, vector<32x1xi32>
    %c0_i32_3 = arith.constant 0 : i32
    %17 = vector.broadcast %c0_i32_3 : i32 to vector<32x1xi32>
    %18 = arith.cmpi sgt, %16, %17 : vector<32x1xi32>
    %c15_i32 = arith.constant 15 : i32
    %19 = vector.broadcast %c15_i32 : i32 to vector<32x1xi32>
    %20 = arith.cmpi slt, %16, %19 : vector<32x1xi32>
    %c0 = arith.constant 0 : index
    %c0_4 = arith.constant 0 : index
    %21 = vector.load %arg0[%c0, %c0_4] : memref<32x64xf32, #tpu.memory_space<vmem>>, vector<32x64xf32>
    %c1_i32_5 = arith.constant 1 : i32
    %22 = tpu.dynamic_rotate %21 by %c1_i32_5 dim 0 : vector<32x64xf32>, i32 -> vector<32x64xf32>
    %cst = arith.constant 0.000000e+00 : f32
    %23 = vector.shape_cast %18 : vector<32x1xi1> to vector<32x1xi1>
    %24 = vector.broadcast %23 : vector<32x1xi1> to vector<32x64xi1>
    %25 = vector.broadcast %cst : f32 to vector<32x64xf32>
    %26 = arith.select %24, %22, %25 : vector<32x64xi1>, vector<32x64xf32>
    %c31_i32 = arith.constant 31 : i32
    %27 = tpu.dynamic_rotate %21 by %c31_i32 dim 0 : vector<32x64xf32>, i32 -> vector<32x64xf32>
    %cst_6 = arith.constant 0.000000e+00 : f32
    %28 = vector.shape_cast %20 : vector<32x1xi1> to vector<32x1xi1>
    %29 = vector.broadcast %28 : vector<32x1xi1> to vector<32x64xi1>
    %30 = vector.broadcast %cst_6 : f32 to vector<32x64xf32>
    %31 = arith.select %29, %27, %30 : vector<32x64xi1>, vector<32x64xf32>
    %c0_7 = arith.constant 0 : index
    %c0_8 = arith.constant 0 : index
    %c0_9 = arith.constant 0 : index
    %32 = vector.load %arg1[%c0_7, %c0_8, %c0_9] : memref<3x64x256xbf16, #tpu.memory_space<vmem>>, vector<1x64x256xbf16>
    %33 = vector.shape_cast %32 : vector<1x64x256xbf16> to vector<64x256xbf16>
    %cst_10 = arith.constant dense<0.000000e+00> : vector<32x256xf32>
    %34 = tpu.matmul %26, %33, %cst_10 {dimension_numbers = #tpu.dot_dimension_numbers<[1], [0], [0], [1], [0, 0, 1, 1], [], []>} : vector<32x64xf32>, vector<64x256xbf16>, vector<32x256xf32> -> vector<32x256xf32>
    %c1 = arith.constant 1 : index
    %c0_11 = arith.constant 0 : index
    %c0_12 = arith.constant 0 : index
    %35 = vector.load %arg1[%c1, %c0_11, %c0_12] : memref<3x64x256xbf16, #tpu.memory_space<vmem>>, vector<1x64x256xbf16>
    %36 = vector.shape_cast %35 : vector<1x64x256xbf16> to vector<64x256xbf16>
    %cst_13 = arith.constant dense<0.000000e+00> : vector<32x256xf32>
    %37 = tpu.matmul %21, %36, %cst_13 {dimension_numbers = #tpu.dot_dimension_numbers<[1], [0], [0], [1], [0, 0, 1, 1], [], []>} : vector<32x64xf32>, vector<64x256xbf16>, vector<32x256xf32> -> vector<32x256xf32>
    %38 = arith.addf %34, %37 : vector<32x256xf32>
    %c2 = arith.constant 2 : index
    %c0_14 = arith.constant 0 : index
    %c0_15 = arith.constant 0 : index
    %39 = vector.load %arg1[%c2, %c0_14, %c0_15] : memref<3x64x256xbf16, #tpu.memory_space<vmem>>, vector<1x64x256xbf16>
    %40 = vector.shape_cast %39 : vector<1x64x256xbf16> to vector<64x256xbf16>
    %cst_16 = arith.constant dense<0.000000e+00> : vector<32x256xf32>
    %41 = tpu.matmul %31, %40, %cst_16 {dimension_numbers = #tpu.dot_dimension_numbers<[1], [0], [0], [1], [0, 0, 1, 1], [], []>} : vector<32x64xf32>, vector<64x256xbf16>, vector<32x256xf32> -> vector<32x256xf32>
    %42 = arith.addf %38, %41 : vector<32x256xf32>
    %c0_17 = arith.constant 0 : index
    %c0_18 = arith.constant 0 : index
    %43 = vector.load %arg2[%c0_17, %c0_18] : memref<1x256xf32, #tpu.memory_space<vmem>>, vector<1x256xf32>
    %44 = vector.broadcast %43 : vector<1x256xf32> to vector<32x256xf32>
    %45 = arith.addf %42, %44 : vector<32x256xf32>
    %46 = math.tanh %45 : vector<32x256xf32>
    %c1_i32_19 = arith.constant 1 : i32
    %47 = tpu.dynamic_rotate %46 by %c1_i32_19 dim 0 : vector<32x256xf32>, i32 -> vector<32x256xf32>
    %cst_20 = arith.constant 0.000000e+00 : f32
    %48 = vector.shape_cast %18 : vector<32x1xi1> to vector<32x1xi1>
    %49 = vector.broadcast %48 : vector<32x1xi1> to vector<32x256xi1>
    %50 = vector.broadcast %cst_20 : f32 to vector<32x256xf32>
    %51 = arith.select %49, %47, %50 : vector<32x256xi1>, vector<32x256xf32>
    %c31_i32_21 = arith.constant 31 : i32
    %52 = tpu.dynamic_rotate %46 by %c31_i32_21 dim 0 : vector<32x256xf32>, i32 -> vector<32x256xf32>
    %cst_22 = arith.constant 0.000000e+00 : f32
    %53 = vector.shape_cast %20 : vector<32x1xi1> to vector<32x1xi1>
    %54 = vector.broadcast %53 : vector<32x1xi1> to vector<32x256xi1>
    %55 = vector.broadcast %cst_22 : f32 to vector<32x256xf32>
    %56 = arith.select %54, %52, %55 : vector<32x256xi1>, vector<32x256xf32>
    %57 = tpu.concatenate %51, %46, %56 in 1 : vector<32x256xf32>, vector<32x256xf32>, vector<32x256xf32> -> vector<32x768xf32>
    %c0_23 = arith.constant 0 : index
    %c0_24 = arith.constant 0 : index
    %58 = vector.load %arg3[%c0_23, %c0_24] : memref<768x64xbf16, #tpu.memory_space<vmem>>, vector<768x64xbf16>
    %cst_25 = arith.constant dense<0.000000e+00> : vector<32x64xf32>
    %59 = tpu.matmul %57, %58, %cst_25 {dimension_numbers = #tpu.dot_dimension_numbers<[1], [0], [0], [1], [0, 0, 1, 1], [], []>} : vector<32x768xf32>, vector<768x64xbf16>, vector<32x64xf32> -> vector<32x64xf32>
    %c0_26 = arith.constant 0 : index
    %c0_27 = arith.constant 0 : index
    %60 = vector.load %arg4[%c0_26, %c0_27] : memref<1x64xf32, #tpu.memory_space<vmem>>, vector<1x64xf32>
    %61 = vector.broadcast %60 : vector<1x64xf32> to vector<32x64xf32>
    %62 = arith.addf %59, %61 : vector<32x64xf32>
    %c0_28 = arith.constant 0 : index
    %c0_29 = arith.constant 0 : index
    %63 = vector.load %arg5[%c0_28, %c0_29] : memref<32x64xf32, #tpu.memory_space<vmem>>, vector<32x64xf32>
    tpu.vector_store %arg5[%c0_28, %c0_29], %62 {strides = array<i32>} : memref<32x64xf32, #tpu.memory_space<vmem>>, vector<32x64xf32>,
    return
  }
}

</mosaic_0001>

<llo_original>
// kernel: vanilla_hypernet_forward.1
$region0: #{vanilla_hypernet_forward.1}
  #allocation0 [shape = 'u32[]', space=smem, size = 0x4, offset = 0x4, fixed_abs, tag = 'smem constant byte address 0x4 - core index']
  #allocation1 [shape = 'u32[144,128]{1,0:T(1,128)}', space=vmem, size = 0x12000, scoped, tag = 'internal scratch']
  %s0 = inlined_call_operand.vmem [shape: f32[32,64], index: 0, kind: input, shape index: {}]
  %s1 = inlined_call_operand.vmem [shape: bf16[3,64,256], index: 1, kind: input, shape index: {}]
  %s2 = inlined_call_operand.vmem [shape: f32[1,256], index: 2, kind: input, shape index: {}]
  %s3 = inlined_call_operand.vmem [shape: bf16[768,64], index: 3, kind: input, shape index: {}]
  %s4 = inlined_call_operand.vmem [shape: f32[1,64], index: 4, kind: input, shape index: {}]
  %s5 = inlined_call_operand.vmem [shape: f32[32,64], index: 5, kind: output, shape index: {}]
  %s6 = sld [smem:[#allocation0]]
  $region30: #{vanilla_hypernet_forward.1} parent=0
    _
  %s8 = ssub.s32 1, %s6
  %s9 = scalar_select 0, %s8, %s6
  // Predicated region
  $region2: #{vanilla_hypernet_forward.1} parent=0 // pred_check
    _
  $region3: #{vanilla_hypernet_forward.1} parent=0 // pred_check_branch
    %11 = sbr.rel (0) target = $region5
  $region4: #{vanilla_hypernet_forward.1} parent=0 // pred_region
    _
  $region5: #{vanilla_hypernet_forward.1} parent=0 // pred_fallthru
    _
  // Predicated region
  $region6: #{vanilla_hypernet_forward.1} parent=0 // pred_check
    _
  $region7: #{vanilla_hypernet_forward.1} parent=0 // pred_check_branch
    %13 = sbr.rel (0) target = $region9
  $region8: #{vanilla_hypernet_forward.1} parent=0 // pred_region
    _
  $region9: #{vanilla_hypernet_forward.1} parent=0 // pred_fallthru
    _
  // Predicated region
  $region10: #{vanilla_hypernet_forward.1} parent=0 // pred_check
    _
  $region11: #{vanilla_hypernet_forward.1} parent=0 // pred_check_branch
    %15 = sbr.rel (0) target = $region13
  $region12: #{vanilla_hypernet_forward.1} parent=0 // pred_region
    _
  $region13: #{vanilla_hypernet_forward.1} parent=0 // pred_fallthru
    _
  // Predicated region
  $region14: #{vanilla_hypernet_forward.1} parent=0 // pred_check
    _
  $region15: #{vanilla_hypernet_forward.1} parent=0 // pred_check_branch
    %17 = sbr.rel (0) target = $region17
  $region16: #{vanilla_hypernet_forward.1} parent=0 // pred_region
    _
  $region17: #{vanilla_hypernet_forward.1} parent=0 // pred_fallthru
    _
  // Predicated region
  $region18: #{vanilla_hypernet_forward.1} parent=0 // pred_check
    _
  $region19: #{vanilla_hypernet_forward.1} parent=0 // pred_check_branch
    %19 = sbr.rel (0) target = $region21
  $region20: #{vanilla_hypernet_forward.1} parent=0 // pred_region
    _
  $region21: #{vanilla_hypernet_forward.1} parent=0 // pred_fallthru
    _
  %v21 = vlaneseq
  %v22 = vshrl.u32 %v21, 7
  %v23 = vadd.s32 %v22, 8
  %v24 = vadd.s32 %v22, 16
  %v25 = vadd.s32 %v22, 24
  %vm26 = vcmp.lt.s32.totalorder %v22, 0
  %v27 = vsub.s32 0, %v22
  %v28 = vsel %vm26, %v27, %v22
  %v29 = vshrl.u32 %v28, 4
  %v30 = vand.u32 %v28, 15
  %v31 = vsub.s32 0, %v30
  %v32 = vsel %vm26, %v31, %v30
  %vm33 = vcmp.lt.s32.totalorder %v23, 0
  %v34 = vsub.s32 0, %v23
  %v35 = vsel %vm33, %v34, %v23
  %v36 = vshrl.u32 %v35, 4
  %v37 = vand.u32 %v35, 15
  %v38 = vsub.s32 0, %v37
  %v39 = vsel %vm33, %v38, %v37
  %vm40 = vcmp.lt.s32.totalorder %v24, 0
  %v41 = vsub.s32 0, %v24
  %v42 = vsel %vm40, %v41, %v24
  %v43 = vshrl.u32 %v42, 4
  %v44 = vand.u32 %v42, 15
  %v45 = vsub.s32 0, %v44
  %v46 = vsel %vm40, %v45, %v44
  %vm47 = vcmp.lt.s32.totalorder %v25, 0
  %v48 = vsub.s32 0, %v25
  %v49 = vsel %vm47, %v48, %v25
  %v50 = vshrl.u32 %v49, 4
  %v51 = vand.u32 %v49, 15
  %v52 = vsub.s32 0, %v51
  %v53 = vsel %vm47, %v52, %v51
  %vm54 = vcmp.ne.s32.totalorder %v32, 0
  %vm55 = vcmp.ne.s32.totalorder %v39, 0
  %vm56 = vcmp.ne.s32.totalorder %v46, 0
  %vm57 = vcmp.ne.s32.totalorder %v53, 0
  %vm58 = vcmp.lt.s32.totalorder %v32, 0
  %vm59 = vcmp.lt.s32.totalorder %v39, 0
  %vm60 = vcmp.lt.s32.totalorder %v46, 0
  %vm61 = vcmp.lt.s32.totalorder %v53, 0
  %vm62 = vmand %vm58, %vm54
  %vm63 = vmand %vm59, %vm55
  %vm64 = vmand %vm60, %vm56
  %vm65 = vmand %vm61, %vm57
  %v66 = vadd.s32 %v32, 16
  %v67 = vadd.s32 %v39, 16
  %v68 = vadd.s32 %v46, 16
  %v69 = vadd.s32 %v53, 16
  %v70 = vsel %vm62, %v66, %v32
  %v71 = vsel %vm63, %v67, %v39
  %v72 = vsel %vm64, %v68, %v46
  %v73 = vsel %vm65, %v69, %v53
  %vm74 = vcmp.gt.s32.totalorder %v70, 0
  %vm75 = vcmp.gt.s32.totalorder %v71, 0
  %vm76 = vcmp.gt.s32.totalorder %v72, 0
  %vm77 = vcmp.gt.s32.totalorder %v73, 0
  %vm78 = vcmp.lt.s32.totalorder %v70, 15
  %vm79 = vcmp.lt.s32.totalorder %v71, 15
  %vm80 = vcmp.lt.s32.totalorder %v72, 15
  %vm81 = vcmp.lt.s32.totalorder %v73, 15
  %v82 = vld [vmem:[%s0] sm:$0xff]
  %v83 = vld [vmem:[%s0 + $0x8] sm:$0xff]
  %v84 = vld [vmem:[%s0 + $0x10] sm:$0xff]
  %v85 = vld [vmem:[%s0 + $0x18] sm:$0xff]
  %v86 = vrot.slane %v82, 7
  %v87 = vrot.slane %v83, 7
  %v88 = vrot.slane %v84, 7
  %v89 = vrot.slane %v85, 7
  %vm90 = vcmp.lt.s32.totalorder %v22, 1
  %v91 = vsel %vm90, %v88, %v89
  %v92 = vsel %vm90, %v87, %v88
  %v93 = vsel %vm90, %v86, %v87
  %v94 = vsel %vm90, %v89, %v86
  %v95 = vsel %vm74, 1, 0
  %v96 = vsel %vm75, 1, 0
  %v97 = vsel %vm76, 1, 0
  %v98 = vsel %vm77, 1, 0
  %vm99 = vcmp.eq.s32.totalorder %v95, 1
  %vm100 = vcmp.eq.s32.totalorder %v96, 1
  %vm101 = vcmp.eq.s32.totalorder %v97, 1
  %vm102 = vcmp.eq.s32.totalorder %v98, 1
  %v103 = vsel %vm99, %v94, 0.0
  %v104 = vsel %vm100, %v93, 0.0
  %v105 = vsel %vm101, %v92, 0.0
  %v106 = vsel %vm102, %v91, 0.0
  %v107 = vrot.slane %v82, 1
  %v108 = vrot.slane %v83, 1
  %v109 = vrot.slane %v84, 1
  %v110 = vrot.slane %v85, 1
  %vm111 = vcmp.lt.s32.totalorder %v22, 7
  %v112 = vsel %vm111, %v109, %v110
  %v113 = vsel %vm111, %v108, %v109
  %v114 = vsel %vm111, %v107, %v108
  %v115 = vsel %vm111, %v110, %v107
  %v116 = vsel %vm78, 1, 0
  %v117 = vsel %vm79, 1, 0
  %v118 = vsel %vm80, 1, 0
  %v119 = vsel %vm81, 1, 0
  %vm120 = vcmp.eq.s32.totalorder %v116, 1
  %vm121 = vcmp.eq.s32.totalorder %v117, 1
  %vm122 = vcmp.eq.s32.totalorder %v118, 1
  %vm123 = vcmp.eq.s32.totalorder %v119, 1
  %v124 = vsel %vm120, %v114, 0.0
  %v125 = vsel %vm121, %v113, 0.0
  %v126 = vsel %vm122, %v112, 0.0
  %v127 = vsel %vm123, %v115, 0.0
  %v128 = vld [vmem:[%s1] sm:$0xff]
  %v129 = vld [vmem:[%s1 + $0x8] sm:$0xff]
  %v130 = vld [vmem:[%s1 + $0x10] sm:$0xff]
  %v131 = vld [vmem:[%s1 + $0x18] sm:$0xff]
  %v132 = vld [vmem:[%s1 + $0x20] sm:$0xff]
  %v133 = vld [vmem:[%s1 + $0x28] sm:$0xff]
  %v134 = vld [vmem:[%s1 + $0x30] sm:$0xff]
  %v135 = vld [vmem:[%s1 + $0x38] sm:$0xff]
  %s136 = scalar_lea.vmem %s1, 64
  %v137 = vld [vmem:[%s136] sm:$0xff]
  %v138 = vld [vmem:[%s136 + $0x8] sm:$0xff]
  %v139 = vld [vmem:[%s136 + $0x10] sm:$0xff]
  %v140 = vld [vmem:[%s136 + $0x18] sm:$0xff]
  %v141 = vld [vmem:[%s136 + $0x20] sm:$0xff]
  %v142 = vld [vmem:[%s136 + $0x28] sm:$0xff]
  %v143 = vld [vmem:[%s136 + $0x30] sm:$0xff]
  %v144 = vld [vmem:[%s136 + $0x38] sm:$0xff]
  %v153 = vunpack.c.l.b16 %v137
  %v154 = vunpack.c.h.b16 %v137
  %v155 = vunpack.c.l.b16 %v138
  %v156 = vunpack.c.h.b16 %v138
  %v157 = vunpack.c.l.b16 %v139
  %v158 = vunpack.c.h.b16 %v139
  %v159 = vunpack.c.l.b16 %v140
  %v160 = vunpack.c.h.b16 %v140
  %v161 = vunpack.c.l.b16 %v141
  %v162 = vunpack.c.h.b16 %v141
  %v163 = vunpack.c.l.b16 %v142
  %v164 = vunpack.c.h.b16 %v142
  %v165 = vunpack.c.l.b16 %v143
  %v166 = vunpack.c.h.b16 %v143
  %v167 = vunpack.c.l.b16 %v144
  %v168 = vunpack.c.h.b16 %v144
  %v169 = vpack.c.b16 %v155, %v153
  %v170 = vpack.c.b16 %v156, %v154
  %v171 = vpack.c.b16 %v159, %v157
  %v172 = vpack.c.b16 %v160, %v158
  %v173 = vpack.c.b16 %v163, %v161
  %v174 = vpack.c.b16 %v164, %v162
  %v175 = vpack.c.b16 %v167, %v165
  %v176 = vpack.c.b16 %v168, %v166
  %vm185 = vcmask 523264
  %v187 = vsel %vm185, %v82, 0
  %v190 = vsel %vm185, %v83, 0
  %v193 = vsel %vm185, %v84, 0
  %v196 = vsel %vm185, %v85, 0
  %198 = vmatprep.subr.bf16.mxu0 %v170
  %199 = vmatpush1.bf16.msra.mxu0 %v169
  %200 = vmatprep.subr.bf16.mxu0 %v172
  %201 = vmatpush1.bf16.msra.mxu0 %v171
  %202 = vmatprep.subr.bf16.mxu0 %v174
  %203 = vmatpush1.bf16.msra.mxu0 %v173
  %204 = vmatprep.subr.bf16.mxu0 %v176
  %205 = vmatpush1.bf16.msra.mxu0 %v175
  %206 = vmatprep.subr.bf16.mxu0 0
  %207 = vmatpush1.bf16.msra.mxu0 0
  %208 = vmatprep.subr.bf16.mxu0 0
  %209 = vmatpush1.bf16.msra.mxu0 0
  %210 = vmatprep.subr.bf16.mxu0 0
  %211 = vmatpush1.bf16.msra.mxu0 0
  %212 = vmatprep.subr.bf16.mxu0 0
  %213 = vmatpush1.bf16.msra.mxu0 0
  %214 = vmatprep.subr.bf16.mxu0 0
  %215 = vmatpush1.bf16.msra.mxu0 0
  %216 = vmatprep.subr.bf16.mxu0 0
  %217 = vmatpush1.bf16.msra.mxu0 0
  %218 = vmatprep.subr.bf16.mxu0 0
  %219 = vmatpush1.bf16.msra.mxu0 0
  %220 = vmatprep.subr.bf16.mxu0 0
  %221 = vmatpush1.bf16.msra.mxu0 0
  %222 = vmatprep.subr.bf16.mxu0 0
  %223 = vmatpush1.bf16.msra.mxu0 0
  %224 = vmatprep.subr.bf16.mxu0 0
  %225 = vmatpush1.bf16.msra.mxu0 0
  %226 = vmatprep.subr.bf16.mxu0 0
  %227 = vmatpush1.bf16.msra.mxu0 0
  %228 = vmatprep.subr.bf16.mxu0 0
  %229 = vmatpush1.bf16.msra.mxu0 0
  %230 = vmatprep.mubr.f32.mxu0 0.0
  %231 = vmatmul.mubr.f32.gmra.mrb[0].mxu0 %v187
  %v232 = vpop.f32.mrb[0].mxu0
  %v233 = vadd.f32 0.0, %v232
  %v234 = vpop.f32.mrb[0].mxu0
  %v235 = vadd.f32 0.0, %v234
  %236 = vmatprep.mubr.f32.mxu0 0.0
  %237 = vmatmul.mubr.f32.gmra.mrb[0].mxu0 %v190
  %v238 = vpop.f32.mrb[0].mxu0
  %v239 = vadd.f32 0.0, %v238
  %v240 = vpop.f32.mrb[0].mxu0
  %v241 = vadd.f32 0.0, %v240
  %242 = vmatprep.mubr.f32.mxu0 0.0
  %243 = vmatmul.mubr.f32.gmra.mrb[0].mxu0 %v193
  %v244 = vpop.f32.mrb[0].mxu0
  %v245 = vadd.f32 0.0, %v244
  %v246 = vpop.f32.mrb[0].mxu0
  %v247 = vadd.f32 0.0, %v246
  %248 = vmatprep.mubr.f32.mxu0 0.0
  %249 = vmatmul.mubr.f32.gmra.mrb[0].mxu0 %v196
  %v250 = vpop.f32.mrb[0].mxu0
  %v251 = vadd.f32 0.0, %v250
  %v252 = vpop.f32.mrb[0].mxu0
  %v253 = vadd.f32 0.0, %v252
  %254 = vdwg.mxu0
  %v263 = vunpack.c.l.b16 %v128
  %v264 = vunpack.c.h.b16 %v128
  %v265 = vunpack.c.l.b16 %v129
  %v266 = vunpack.c.h.b16 %v129
  %v267 = vunpack.c.l.b16 %v130
  %v268 = vunpack.c.h.b16 %v130
  %v269 = vunpack.c.l.b16 %v131
  %v270 = vunpack.c.h.b16 %v131
  %v271 = vunpack.c.l.b16 %v132
  %v272 = vunpack.c.h.b16 %v132
  %v273 = vunpack.c.l.b16 %v133
  %v274 = vunpack.c.h.b16 %v133
  %v275 = vunpack.c.l.b16 %v134
  %v276 = vunpack.c.h.b16 %v134
  %v277 = vunpack.c.l.b16 %v135
  %v278 = vunpack.c.h.b16 %v135
  %v279 = vpack.c.b16 %v265, %v263
  %v280 = vpack.c.b16 %v266, %v264
  %v281 = vpack.c.b16 %v269, %v267
  %v282 = vpack.c.b16 %v270, %v268
  %v283 = vpack.c.b16 %v273, %v271
  %v284 = vpack.c.b16 %v274, %v272
  %v285 = vpack.c.b16 %v277, %v275
  %v286 = vpack.c.b16 %v278, %v276
  %v296 = vsel %vm185, %v103, 0
  %v299 = vsel %vm185, %v104, 0
  %v302 = vsel %vm185, %v105, 0
  %v305 = vsel %vm185, %v106, 0
  %307 = vmatprep.subr.bf16.mxu0 %v280
  %308 = vmatpush1.bf16.msra.mxu0 %v279
  %309 = vmatprep.subr.bf16.mxu0 %v282
  %310 = vmatpush1.bf16.msra.mxu0 %v281
  %311 = vmatprep.subr.bf16.mxu0 %v284
  %312 = vmatpush1.bf16.msra.mxu0 %v283
  %313 = vmatprep.subr.bf16.mxu0 %v286
  %314 = vmatpush1.bf16.msra.mxu0 %v285
  %315 = vmatprep.subr.bf16.mxu0 0
  %316 = vmatpush1.bf16.msra.mxu0 0
  %317 = vmatprep.subr.bf16.mxu0 0
  %318 = vmatpush1.bf16.msra.mxu0 0
  %319 = vmatprep.subr.bf16.mxu0 0
  %320 = vmatpush1.bf16.msra.mxu0 0
  %321 = vmatprep.subr.bf16.mxu0 0
  %322 = vmatpush1.bf16.msra.mxu0 0
  %323 = vmatprep.subr.bf16.mxu0 0
  %324 = vmatpush1.bf16.msra.mxu0 0
  %325 = vmatprep.subr.bf16.mxu0 0
  %326 = vmatpush1.bf16.msra.mxu0 0
  %327 = vmatprep.subr.bf16.mxu0 0
  %328 = vmatpush1.bf16.msra.mxu0 0
  %329 = vmatprep.subr.bf16.mxu0 0
  %330 = vmatpush1.bf16.msra.mxu0 0
  %331 = vmatprep.subr.bf16.mxu0 0
  %332 = vmatpush1.bf16.msra.mxu0 0
  %333 = vmatprep.subr.bf16.mxu0 0
  %334 = vmatpush1.bf16.msra.mxu0 0
  %335 = vmatprep.subr.bf16.mxu0 0
  %336 = vmatpush1.bf16.msra.mxu0 0
  %337 = vmatprep.subr.bf16.mxu0 0
  %338 = vmatpush1.bf16.msra.mxu0 0
  %339 = vmatprep.mubr.f32.mxu0 0.0
  %340 = vmatmul.mubr.f32.gmra.mrb[0].mxu0 %v296
  %v341 = vpop.f32.mrb[0].mxu0
  %v342 = vadd.f32 %v233, %v341
  %v343 = vpop.f32.mrb[0].mxu0
  %v344 = vadd.f32 %v235, %v343
  %345 = vmatprep.mubr.f32.mxu0 0.0
  %346 = vmatmul.mubr.f32.gmra.mrb[0].mxu0 %v299
  %v347 = vpop.f32.mrb[0].mxu0
  %v348 = vadd.f32 %v239, %v347
  %v349 = vpop.f32.mrb[0].mxu0
  %v350 = vadd.f32 %v241, %v349
  %351 = vmatprep.mubr.f32.mxu0 0.0
  %352 = vmatmul.mubr.f32.gmra.mrb[0].mxu0 %v302
  %v353 = vpop.f32.mrb[0].mxu0
  %v354 = vadd.f32 %v245, %v353
  %v355 = vpop.f32.mrb[0].mxu0
  %v356 = vadd.f32 %v247, %v355
  %357 = vmatprep.mubr.f32.mxu0 0.0
  %358 = vmatmul.mubr.f32.gmra.mrb[0].mxu0 %v305
  %v359 = vpop.f32.mrb[0].mxu0
  %v360 = vadd.f32 %v251, %v359
  %v361 = vpop.f32.mrb[0].mxu0
  %v362 = vadd.f32 %v253, %v361
  %363 = vdwg.mxu0
  %s364 = scalar_lea.vmem %s1, 128
  %v365 = vld [vmem:[%s364] sm:$0xff]
  %v366 = vld [vmem:[%s364 + $0x8] sm:$0xff]
  %v367 = vld [vmem:[%s364 + $0x10] sm:$0xff]
  %v368 = vld [vmem:[%s364 + $0x18] sm:$0xff]
  %v369 = vld [vmem:[%s364 + $0x20] sm:$0xff]
  %v370 = vld [vmem:[%s364 + $0x28] sm:$0xff]
  %v371 = vld [vmem:[%s364 + $0x30] sm:$0xff]
  %v372 = vld [vmem:[%s364 + $0x38] sm:$0xff]
  %v381 = vunpack.c.l.b16 %v365
  %v382 = vunpack.c.h.b16 %v365
  %v383 = vunpack.c.l.b16 %v366
  %v384 = vunpack.c.h.b16 %v366
  %v385 = vunpack.c.l.b16 %v367
  %v386 = vunpack.c.h.b16 %v367
  %v387 = vunpack.c.l.b16 %v368
  %v388 = vunpack.c.h.b16 %v368
  %v389 = vunpack.c.l.b16 %v369
  %v390 = vunpack.c.h.b16 %v369
  %v391 = vunpack.c.l.b16 %v370
  %v392 = vunpack.c.h.b16 %v370
  %v393 = vunpack.c.l.b16 %v371
  %v394 = vunpack.c.h.b16 %v371
  %v395 = vunpack.c.l.b16 %v372
  %v396 = vunpack.c.h.b16 %v372
  %v397 = vpack.c.b16 %v383, %v381
  %v398 = vpack.c.b16 %v384, %v382
  %v399 = vpack.c.b16 %v387, %v385
  %v400 = vpack.c.b16 %v388, %v386
  %v401 = vpack.c.b16 %v391, %v389
  %v402 = vpack.c.b16 %v392, %v390
  %v403 = vpack.c.b16 %v395, %v393
  %v404 = vpack.c.b16 %v396, %v394
  %v414 = vsel %vm185, %v124, 0
  %v417 = vsel %vm185, %v125, 0
  %v420 = vsel %vm185, %v126, 0
  %v423 = vsel %vm185, %v127, 0
  %425 = vmatprep.subr.bf16.mxu0 %v398
  %426 = vmatpush1.bf16.msra.mxu0 %v397
  %427 = vmatprep.subr.bf16.mxu0 %v400
  %428 = vmatpush1.bf16.msra.mxu0 %v399
  %429 = vmatprep.subr.bf16.mxu0 %v402
  %430 = vmatpush1.bf16.msra.mxu0 %v401
  %431 = vmatprep.subr.bf16.mxu0 %v404
  %432 = vmatpush1.bf16.msra.mxu0 %v403
  %433 = vmatprep.subr.bf16.mxu0 0
  %434 = vmatpush1.bf16.msra.mxu0 0
  %435 = vmatprep.subr.bf16.mxu0 0
  %436 = vmatpush1.bf16.msra.mxu0 0
  %437 = vmatprep.subr.bf16.mxu0 0
  %438 = vmatpush1.bf16.msra.mxu0 0
  %439 = vmatprep.subr.bf16.mxu0 0
  %440 = vmatpush1.bf16.msra.mxu0 0
  %441 = vmatprep.subr.bf16.mxu0 0
  %442 = vmatpush1.bf16.msra.mxu0 0
  %443 = vmatprep.subr.bf16.mxu0 0
  %444 = vmatpush1.bf16.msra.mxu0 0
  %445 = vmatprep.subr.bf16.mxu0 0
  %446 = vmatpush1.bf16.msra.mxu0 0
  %447 = vmatprep.subr.bf16.mxu0 0
  %448 = vmatpush1.bf16.msra.mxu0 0
  %449 = vmatprep.subr.bf16.mxu0 0
  %450 = vmatpush1.bf16.msra.mxu0 0
  %451 = vmatprep.subr.bf16.mxu0 0
  %452 = vmatpush1.bf16.msra.mxu0 0
  %453 = vmatprep.subr.bf16.mxu0 0
  %454 = vmatpush1.bf16.msra.mxu0 0
  %455 = vmatprep.subr.bf16.mxu0 0
  %456 = vmatpush1.bf16.msra.mxu0 0
  %457 = vmatprep.mubr.f32.mxu0 0.0
  %458 = vmatmul.mubr.f32.gmra.mrb[0].mxu0 %v414
  %v459 = vpop.f32.mrb[0].mxu0
  %v460 = vadd.f32 0.0, %v459
  %v461 = vpop.f32.mrb[0].mxu0
  %v462 = vadd.f32 0.0, %v461
  %463 = vmatprep.mubr.f32.mxu0 0.0
  %464 = vmatmul.mubr.f32.gmra.mrb[0].mxu0 %v417
  %v465 = vpop.f32.mrb[0].mxu0
  %v466 = vadd.f32 0.0, %v465
  %v467 = vpop.f32.mrb[0].mxu0
  %v468 = vadd.f32 0.0, %v467
  %469 = vmatprep.mubr.f32.mxu0 0.0
  %470 = vmatmul.mubr.f32.gmra.mrb[0].mxu0 %v420
  %v471 = vpop.f32.mrb[0].mxu0
  %v472 = vadd.f32 0.0, %v471
  %v473 = vpop.f32.mrb[0].mxu0
  %v474 = vadd.f32 0.0, %v473
  %475 = vmatprep.mubr.f32.mxu0 0.0
  %476 = vmatmul.mubr.f32.gmra.mrb[0].mxu0 %v423
  %v477 = vpop.f32.mrb[0].mxu0
  %v478 = vadd.f32 0.0, %v477
  %v479 = vpop.f32.mrb[0].mxu0
  %v480 = vadd.f32 0.0, %v479
  %481 = vdwg.mxu0
  %v482 = vadd.f32 %v342, %v460
  %v483 = vadd.f32 %v344, %v462
  %v484 = vadd.f32 %v348, %v466
  %v485 = vadd.f32 %v350, %v468
  %v486 = vadd.f32 %v354, %v472
  %v487 = vadd.f32 %v356, %v474
  %v488 = vadd.f32 %v360, %v478
  %v489 = vadd.f32 %v362, %v480
  %v490 = vld [vmem:[%s2] sm:$0x3]
  %v492 = vlaneseq
  %v493 = vshrl.u32 %v492, 7
  %v494 = vsub.s32 0, %v493
  %v495 = vrot.slane %v490, %v494
  %v496 = vlaneseq
  %v497 = vshrl.u32 %v496, 7
  %v498 = vsub.s32 1, %v497
  %v499 = vrot.slane %v490, %v498
  %v502 = vadd.f32 %v482, %v495
  %v503 = vadd.f32 %v483, %v499
  %v504 = vadd.f32 %v484, %v495
  %v505 = vadd.f32 %v485, %v499
  %v506 = vadd.f32 %v486, %v495
  %v507 = vadd.f32 %v487, %v499
  %v508 = vadd.f32 %v488, %v495
  %v509 = vadd.f32 %v489, %v499
  %v510 = vtanh.pop %v502
  %v511 = vtanh.pop %v503
  %v512 = vtanh.pop %v504
  %v513 = vtanh.pop %v505
  %v514 = vtanh.pop %v506
  %v515 = vtanh.pop %v507
  %v516 = vtanh.pop %v508
  %v517 = vtanh.pop %v509
  %v518 = vrot.slane %v510, 7
  %v519 = vrot.slane %v511, 7
  %v520 = vrot.slane %v512, 7
  %v521 = vrot.slane %v513, 7
  %v522 = vrot.slane %v514, 7
  %v523 = vrot.slane %v515, 7
  %v524 = vrot.slane %v516, 7
  %v525 = vrot.slane %v517, 7
  %v526 = vsel %vm90, %v522, %v524
  %v527 = vsel %vm90, %v523, %v525
  %v528 = vsel %vm90, %v520, %v522
  %v529 = vsel %vm90, %v521, %v523
  %v530 = vsel %vm90, %v518, %v520
  %v531 = vsel %vm90, %v519, %v521
  %v532 = vsel %vm90, %v524, %v518
  %v533 = vsel %vm90, %v525, %v519
  %v534 = vsel %vm99, %v532, 0.0
  %v535 = vsel %vm99, %v533, 0.0
  %v536 = vsel %vm100, %v530, 0.0
  %v537 = vsel %vm100, %v531, 0.0
  %v538 = vsel %vm101, %v528, 0.0
  %v539 = vsel %vm101, %v529, 0.0
  %v540 = vsel %vm102, %v526, 0.0
  %v541 = vsel %vm102, %v527, 0.0
  %v542 = vrot.slane %v510, 1
  %v543 = vrot.slane %v511, 1
  %v544 = vrot.slane %v512, 1
  %v545 = vrot.slane %v513, 1
  %v546 = vrot.slane %v514, 1
  %v547 = vrot.slane %v515, 1
  %v548 = vrot.slane %v516, 1
  %v549 = vrot.slane %v517, 1
  %v550 = vsel %vm111, %v546, %v548
  %v551 = vsel %vm111, %v547, %v549
  %v552 = vsel %vm111, %v544, %v546
  %v553 = vsel %vm111, %v545, %v547
  %v554 = vsel %vm111, %v542, %v544
  %v555 = vsel %vm111, %v543, %v545
  %v556 = vsel %vm111, %v548, %v542
  %v557 = vsel %vm111, %v549, %v543
  %v558 = vsel %vm120, %v554, 0.0
  %v559 = vsel %vm120, %v555, 0.0
  %v560 = vsel %vm121, %v552, 0.0
  %v561 = vsel %vm121, %v553, 0.0
  %v562 = vsel %vm122, %v550, 0.0
  %v563 = vsel %vm122, %v551, 0.0
  %v564 = vsel %vm123, %v556, 0.0
  %v565 = vsel %vm123, %v557, 0.0
  %v566 = vld [vmem:[%s3] sm:$0xf]
  %v567 = vld [vmem:[%s3 + $0x4] sm:$0xf]
  %v568 = vld [vmem:[%s3 + $0x8] sm:$0xf]
  %v569 = vld [vmem:[%s3 + $0xc] sm:$0xf]
  %v570 = vld [vmem:[%s3 + $0x10] sm:$0xf]
  %v571 = vld [vmem:[%s3 + $0x14] sm:$0xf]
  %v572 = vld [vmem:[%s3 + $0x18] sm:$0xf]
  %v573 = vld [vmem:[%s3 + $0x1c] sm:$0xf]
  %v574 = vld [vmem:[%s3 + $0x20] sm:$0xf]
  %v575 = vld [vmem:[%s3 + $0x24] sm:$0xf]
  %v576 = vld [vmem:[%s3 + $0x28] sm:$0xf]
  %v577 = vld [vmem:[%s3 + $0x2c] sm:$0xf]
  %v578 = vld [vmem:[%s3 + $0x30] sm:$0xf]
  %v579 = vld [vmem:[%s3 + $0x34] sm:$0xf]
  %v580 = vld [vmem:[%s3 + $0x38] sm:$0xf]
  %v581 = vld [vmem:[%s3 + $0x3c] sm:$0xf]
  %v582 = vld [vmem:[%s3 + $0x40] sm:$0xf]
  %v583 = vld [vmem:[%s3 + $0x44] sm:$0xf]
  %v584 = vld [vmem:[%s3 + $0x48] sm:$0xf]
  %v585 = vld [vmem:[%s3 + $0x4c] sm:$0xf]
  %v586 = vld [vmem:[%s3 + $0x50] sm:$0xf]
  %v587 = vld [vmem:[%s3 + $0x54] sm:$0xf]
  %v588 = vld [vmem:[%s3 + $0x58] sm:$0xf]
  %v589 = vld [vmem:[%s3 + $0x5c] sm:$0xf]
  %v590 = vld [vmem:[%s3 + $0x60] sm:$0xf]
  %v591 = vld [vmem:[%s3 + $0x64] sm:$0xf]
  %v592 = vld [vmem:[%s3 + $0x68] sm:$0xf]
  %v593 = vld [vmem:[%s3 + $0x6c] sm:$0xf]
  %v594 = vld [vmem:[%s3 + $0x70] sm:$0xf]
  %v595 = vld [vmem:[%s3 + $0x74] sm:$0xf]
  %v596 = vld [vmem:[%s3 + $0x78] sm:$0xf]
  %v597 = vld [vmem:[%s3 + $0x7c] sm:$0xf]
  %v598 = vld [vmem:[%s3 + $0x80] sm:$0xf]
  %v599 = vld [vmem:[%s3 + $0x84] sm:$0xf]
  %v600 = vld [vmem:[%s3 + $0x88] sm:$0xf]
  %v601 = vld [vmem:[%s3 + $0x8c] sm:$0xf]
  %v602 = vld [vmem:[%s3 + $0x90] sm:$0xf]
  %v603 = vld [vmem:[%s3 + $0x94] sm:$0xf]
  %v604 = vld [vmem:[%s3 + $0x98] sm:$0xf]
  %v605 = vld [vmem:[%s3 + $0x9c] sm:$0xf]
  %v606 = vld [vmem:[%s3 + $0xa0] sm:$0xf]
  %v607 = vld [vmem:[%s3 + $0xa4] sm:$0xf]
  %v608 = vld [vmem:[%s3 + $0xa8] sm:$0xf]
  %v609 = vld [vmem:[%s3 + $0xac] sm:$0xf]
  %v610 = vld [vmem:[%s3 + $0xb0] sm:$0xf]
  %v611 = vld [vmem:[%s3 + $0xb4] sm:$0xf]
  %v612 = vld [vmem:[%s3 + $0xb8] sm:$0xf]
  %v613 = vld [vmem:[%s3 + $0xbc] sm:$0xf]
  %v614 = vld [vmem:[%s3 + $0xc0] sm:$0xf]
  %v615 = vld [vmem:[%s3 + $0xc4] sm:$0xf]
  %v616 = vld [vmem:[%s3 + $0xc8] sm:$0xf]
  %v617 = vld [vmem:[%s3 + $0xcc] sm:$0xf]
  %v618 = vld [vmem:[%s3 + $0xd0] sm:$0xf]
  %v619 = vld [vmem:[%s3 + $0xd4] sm:$0xf]
  %v620 = vld [vmem:[%s3 + $0xd8] sm:$0xf]
  %v621 = vld [vmem:[%s3 + $0xdc] sm:$0xf]
  %v622 = vld [vmem:[%s3 + $0xe0] sm:$0xf]
  %v623 = vld [vmem:[%s3 + $0xe4] sm:$0xf]
  %v624 = vld [vmem:[%s3 + $0xe8] sm:$0xf]
  %v625 = vld [vmem:[%s3 + $0xec] sm:$0xf]
  %v626 = vld [vmem:[%s3 + $0xf0] sm:$0xf]
  %v627 = vld [vmem:[%s3 + $0xf4] sm:$0xf]
  %v628 = vld [vmem:[%s3 + $0xf8] sm:$0xf]
  %v629 = vld [vmem:[%s3 + $0xfc] sm:$0xf]
  %v630 = vld [vmem:[%s3 + $0x100] sm:$0xf]
  %v631 = vld [vmem:[%s3 + $0x104] sm:$0xf]
  %v632 = vld [vmem:[%s3 + $0x108] sm:$0xf]
  %v633 = vld [vmem:[%s3 + $0x10c] sm:$0xf]
  %v634 = vld [vmem:[%s3 + $0x110] sm:$0xf]
  %v635 = vld [vmem:[%s3 + $0x114] sm:$0xf]
  %v636 = vld [vmem:[%s3 + $0x118] sm:$0xf]
  %v637 = vld [vmem:[%s3 + $0x11c] sm:$0xf]
  %v638 = vld [vmem:[%s3 + $0x120] sm:$0xf]
  %v639 = vld [vmem:[%s3 + $0x124] sm:$0xf]
  %v640 = vld [vmem:[%s3 + $0x128] sm:$0xf]
  %v641 = vld [vmem:[%s3 + $0x12c] sm:$0xf]
  %v642 = vld [vmem:[%s3 + $0x130] sm:$0xf]
  %v643 = vld [vmem:[%s3 + $0x134] sm:$0xf]
  %v644 = vld [vmem:[%s3 + $0x138] sm:$0xf]
  %v645 = vld [vmem:[%s3 + $0x13c] sm:$0xf]
  %v646 = vld [vmem:[%s3 + $0x140] sm:$0xf]
  %v647 = vld [vmem:[%s3 + $0x144] sm:$0xf]
  %v648 = vld [vmem:[%s3 + $0x148] sm:$0xf]
  %v649 = vld [vmem:[%s3 + $0x14c] sm:$0xf]
  %v650 = vld [vmem:[%s3 + $0x150] sm:$0xf]
  %v651 = vld [vmem:[%s3 + $0x154] sm:$0xf]
  %v652 = vld [vmem:[%s3 + $0x158] sm:$0xf]
  %v653 = vld [vmem:[%s3 + $0x15c] sm:$0xf]
  %v654 = vld [vmem:[%s3 + $0x160] sm:$0xf]
  %v655 = vld [vmem:[%s3 + $0x164] sm:$0xf]
  %v656 = vld [vmem:[%s3 + $0x168] sm:$0xf]
  %v657 = vld [vmem:[%s3 + $0x16c] sm:$0xf]
  %v658 = vld [vmem:[%s3 + $0x170] sm:$0xf]
  %v659 = vld [vmem:[%s3 + $0x174] sm:$0xf]
  %v660 = vld [vmem:[%s3 + $0x178] sm:$0xf]
  %v661 = vld [vmem:[%s3 + $0x17c] sm:$0xf]
  %v662 = vld [vmem:[%s4] sm:$0x1]
  %v664 = vlaneseq
  %v665 = vshrl.u32 %v664, 7
  %v666 = vsub.s32 0, %v665
  %v667 = vrot.slane %v662, %v666
  %v765 = vunpack.c.l.b16 %v566
  %v766 = vunpack.c.l.b16 %v567
  %v767 = vunpack.c.l.b16 %v568
  %v768 = vunpack.c.l.b16 %v569
  %v769 = vunpack.c.l.b16 %v570
  %v770 = vunpack.c.l.b16 %v571
  %v771 = vunpack.c.l.b16 %v572
  %v772 = vunpack.c.l.b16 %v573
  %v773 = vunpack.c.l.b16 %v574
  %v774 = vunpack.c.l.b16 %v575
  %v775 = vunpack.c.l.b16 %v576
  %v776 = vunpack.c.l.b16 %v577
  %v777 = vunpack.c.l.b16 %v578
  %v778 = vunpack.c.l.b16 %v579
  %v779 = vunpack.c.l.b16 %v580
  %v780 = vunpack.c.l.b16 %v581
  %v781 = vunpack.c.l.b16 %v582
  %v782 = vunpack.c.l.b16 %v583
  %v783 = vunpack.c.l.b16 %v584
  %v784 = vunpack.c.l.b16 %v585
  %v785 = vunpack.c.l.b16 %v586
  %v786 = vunpack.c.l.b16 %v587
  %v787 = vunpack.c.l.b16 %v588
  %v788 = vunpack.c.l.b16 %v589
  %v789 = vunpack.c.l.b16 %v590
  %v790 = vunpack.c.l.b16 %v591
  %v791 = vunpack.c.l.b16 %v592
  %v792 = vunpack.c.l.b16 %v593
  %v793 = vunpack.c.l.b16 %v594
  %v794 = vunpack.c.l.b16 %v595
  %v795 = vunpack.c.l.b16 %v596
  %v796 = vunpack.c.l.b16 %v597
  %v797 = vunpack.c.l.b16 %v598
  %v798 = vunpack.c.l.b16 %v599
  %v799 = vunpack.c.l.b16 %v600
  %v800 = vunpack.c.l.b16 %v601
  %v801 = vunpack.c.l.b16 %v602
  %v802 = vunpack.c.l.b16 %v603
  %v803 = vunpack.c.l.b16 %v604
  %v804 = vunpack.c.l.b16 %v605
  %v805 = vunpack.c.l.b16 %v606
  %v806 = vunpack.c.l.b16 %v607
  %v807 = vunpack.c.l.b16 %v608
  %v808 = vunpack.c.l.b16 %v609
  %v809 = vunpack.c.l.b16 %v610
  %v810 = vunpack.c.l.b16 %v611
  %v811 = vunpack.c.l.b16 %v612
  %v812 = vunpack.c.l.b16 %v613
  %v813 = vunpack.c.l.b16 %v614
  %v814 = vunpack.c.l.b16 %v615
  %v815 = vunpack.c.l.b16 %v616
  %v816 = vunpack.c.l.b16 %v617
  %v817 = vunpack.c.l.b16 %v618
  %v818 = vunpack.c.l.b16 %v619
  %v819 = vunpack.c.l.b16 %v620
  %v820 = vunpack.c.l.b16 %v621
  %v821 = vunpack.c.l.b16 %v622
  %v822 = vunpack.c.l.b16 %v623
  %v823 = vunpack.c.l.b16 %v624
  %v824 = vunpack.c.l.b16 %v625
  %v825 = vunpack.c.l.b16 %v626
  %v826 = vunpack.c.l.b16 %v627
  %v827 = vunpack.c.l.b16 %v628
  %v828 = vunpack.c.l.b16 %v629
  %v829 = vunpack.c.l.b16 %v630
  %v830 = vunpack.c.l.b16 %v631
  %v831 = vunpack.c.l.b16 %v632
  %v832 = vunpack.c.l.b16 %v633
  %v833 = vunpack.c.l.b16 %v634
  %v834 = vunpack.c.l.b16 %v635
  %v835 = vunpack.c.l.b16 %v636
  %v836 = vunpack.c.l.b16 %v637
  %v837 = vunpack.c.l.b16 %v638
  %v838 = vunpack.c.l.b16 %v639
  %v839 = vunpack.c.l.b16 %v640
  %v840 = vunpack.c.l.b16 %v641
  %v841 = vunpack.c.l.b16 %v642
  %v842 = vunpack.c.l.b16 %v643
  %v843 = vunpack.c.l.b16 %v644
  %v844 = vunpack.c.l.b16 %v645
  %v845 = vunpack.c.l.b16 %v646
  %v846 = vunpack.c.l.b16 %v647
  %v847 = vunpack.c.l.b16 %v648
  %v848 = vunpack.c.l.b16 %v649
  %v849 = vunpack.c.l.b16 %v650
  %v850 = vunpack.c.l.b16 %v651
  %v851 = vunpack.c.l.b16 %v652
  %v852 = vunpack.c.l.b16 %v653
  %v853 = vunpack.c.l.b16 %v654
  %v854 = vunpack.c.l.b16 %v655
  %v855 = vunpack.c.l.b16 %v656
  %v856 = vunpack.c.l.b16 %v657
  %v857 = vunpack.c.l.b16 %v658
  %v858 = vunpack.c.l.b16 %v659
  %v859 = vunpack.c.l.b16 %v660
  %v860 = vunpack.c.l.b16 %v661
  %v861 = vpack.c.b16 %v766, %v765
  %v862 = vpack.c.b16 %v768, %v767
  %v863 = vpack.c.b16 %v770, %v769
  %v864 = vpack.c.b16 %v772, %v771
  %v865 = vpack.c.b16 %v774, %v773
  %v866 = vpack.c.b16 %v776, %v775
  %v867 = vpack.c.b16 %v778, %v777
  %v868 = vpack.c.b16 %v780, %v779
  %v869 = vpack.c.b16 %v782, %v781
  %v870 = vpack.c.b16 %v784, %v783
  %v871 = vpack.c.b16 %v786, %v785
  %v872 = vpack.c.b16 %v788, %v787
  %v873 = vpack.c.b16 %v790, %v789
  %v874 = vpack.c.b16 %v792, %v791
  %v875 = vpack.c.b16 %v794, %v793
  %v876 = vpack.c.b16 %v796, %v795
  %v877 = vpack.c.b16 %v798, %v797
  %v878 = vpack.c.b16 %v800, %v799
  %v879 = vpack.c.b16 %v802, %v801
  %v880 = vpack.c.b16 %v804, %v803
  %v881 = vpack.c.b16 %v806, %v805
  %v882 = vpack.c.b16 %v808, %v807
  %v883 = vpack.c.b16 %v810, %v809
  %v884 = vpack.c.b16 %v812, %v811
  %v885 = vpack.c.b16 %v814, %v813
  %v886 = vpack.c.b16 %v816, %v815
  %v887 = vpack.c.b16 %v818, %v817
  %v888 = vpack.c.b16 %v820, %v819
  %v889 = vpack.c.b16 %v822, %v821
  %v890 = vpack.c.b16 %v824, %v823
  %v891 = vpack.c.b16 %v826, %v825
  %v892 = vpack.c.b16 %v828, %v827
  %v893 = vpack.c.b16 %v830, %v829
  %v894 = vpack.c.b16 %v832, %v831
  %v895 = vpack.c.b16 %v834, %v833
  %v896 = vpack.c.b16 %v836, %v835
  %v897 = vpack.c.b16 %v838, %v837
  %v898 = vpack.c.b16 %v840, %v839
  %v899 = vpack.c.b16 %v842, %v841
  %v900 = vpack.c.b16 %v844, %v843
  %v901 = vpack.c.b16 %v846, %v845
  %v902 = vpack.c.b16 %v848, %v847
  %v903 = vpack.c.b16 %v850, %v849
  %v904 = vpack.c.b16 %v852, %v851
  %v905 = vpack.c.b16 %v854, %v853
  %v906 = vpack.c.b16 %v856, %v855
  %v907 = vpack.c.b16 %v858, %v857
  %v908 = vpack.c.b16 %v860, %v859
  %957 = vmatprep.subr.bf16.mxu0 0
  %958 = vmatpush1.bf16.msra.mxu0 %v861
  %959 = vmatprep.subr.bf16.mxu0 0
  %960 = vmatpush1.bf16.msra.mxu0 %v862
  %961 = vmatprep.subr.bf16.mxu0 0
  %962 = vmatpush1.bf16.msra.mxu0 %v863
  %963 = vmatprep.subr.bf16.mxu0 0
  %964 = vmatpush1.bf16.msra.mxu0 %v864
  %965 = vmatprep.subr.bf16.mxu0 0
  %966 = vmatpush1.bf16.msra.mxu0 %v865
  %967 = vmatprep.subr.bf16.mxu0 0
  %968 = vmatpush1.bf16.msra.mxu0 %v866
  %969 = vmatprep.subr.bf16.mxu0 0
  %970 = vmatpush1.bf16.msra.mxu0 %v867
  %971 = vmatprep.subr.bf16.mxu0 0
  %972 = vmatpush1.bf16.msra.mxu0 %v868
  %973 = vmatprep.subr.bf16.mxu0 0
  %974 = vmatpush1.bf16.msra.mxu0 %v869
  %975 = vmatprep.subr.bf16.mxu0 0
  %976 = vmatpush1.bf16.msra.mxu0 %v870
  %977 = vmatprep.subr.bf16.mxu0 0
  %978 = vmatpush1.bf16.msra.mxu0 %v871
  %979 = vmatprep.subr.bf16.mxu0 0
  %980 = vmatpush1.bf16.msra.mxu0 %v872
  %981 = vmatprep.subr.bf16.mxu0 0
  %982 = vmatpush1.bf16.msra.mxu0 %v873
  %983 = vmatprep.subr.bf16.mxu0 0
  %984 = vmatpush1.bf16.msra.mxu0 %v874
  %985 = vmatprep.subr.bf16.mxu0 0
  %986 = vmatpush1.bf16.msra.mxu0 %v875
  %987 = vmatprep.subr.bf16.mxu0 0
  %988 = vmatpush1.bf16.msra.mxu0 %v876
  %989 = vmatprep.mubr.f32.mxu0 %v535
  %990 = vmatmul.mubr.f32.gmra.mrb[0].mxu0 %v534
  %v991 = vpop.f32.mrb[0].mxu0
  %v992 = vadd.f32 %v667, %v991
  %v993 = vpop.f32.mrb[0].mxu0
  %994 = vmatprep.mubr.f32.mxu0 %v537
  %995 = vmatmul.mubr.f32.gmra.mrb[0].mxu0 %v536
  %v996 = vpop.f32.mrb[0].mxu0
  %v997 = vadd.f32 %v667, %v996
  %v998 = vpop.f32.mrb[0].mxu0
  %999 = vmatprep.mubr.f32.mxu0 %v539
  %1000 = vmatmul.mubr.f32.gmra.mrb[0].mxu0 %v538
  %v1001 = vpop.f32.mrb[0].mxu0
  %v1002 = vadd.f32 %v667, %v1001
  %v1003 = vpop.f32.mrb[0].mxu0
  %1004 = vmatprep.mubr.f32.mxu0 %v541
  %1005 = vmatmul.mubr.f32.gmra.mrb[0].mxu0 %v540
  %v1006 = vpop.f32.mrb[0].mxu0
  %v1007 = vadd.f32 %v667, %v1006
  %v1008 = vpop.f32.mrb[0].mxu0
  %1009 = vdwg.mxu0
  %1010 = vmatprep.subr.bf16.mxu0 0
  %1011 = vmatpush1.bf16.msra.mxu0 %v877
  %1012 = vmatprep.subr.bf16.mxu0 0
  %1013 = vmatpush1.bf16.msra.mxu0 %v878
  %1014 = vmatprep.subr.bf16.mxu0 0
  %1015 = vmatpush1.bf16.msra.mxu0 %v879
  %1016 = vmatprep.subr.bf16.mxu0 0
  %1017 = vmatpush1.bf16.msra.mxu0 %v880
  %1018 = vmatprep.subr.bf16.mxu0 0
  %1019 = vmatpush1.bf16.msra.mxu0 %v881
  %1020 = vmatprep.subr.bf16.mxu0 0
  %1021 = vmatpush1.bf16.msra.mxu0 %v882
  %1022 = vmatprep.subr.bf16.mxu0 0
  %1023 = vmatpush1.bf16.msra.mxu0 %v883
  %1024 = vmatprep.subr.bf16.mxu0 0
  %1025 = vmatpush1.bf16.msra.mxu0 %v884
  %1026 = vmatprep.subr.bf16.mxu0 0
  %1027 = vmatpush1.bf16.msra.mxu0 %v885
  %1028 = vmatprep.subr.bf16.mxu0 0
  %1029 = vmatpush1.bf16.msra.mxu0 %v886
  %1030 = vmatprep.subr.bf16.mxu0 0
  %1031 = vmatpush1.bf16.msra.mxu0 %v887
  %1032 = vmatprep.subr.bf16.mxu0 0
  %1033 = vmatpush1.bf16.msra.mxu0 %v888
  %1034 = vmatprep.subr.bf16.mxu0 0
  %1035 = vmatpush1.bf16.msra.mxu0 %v889
  %1036 = vmatprep.subr.bf16.mxu0 0
  %1037 = vmatpush1.bf16.msra.mxu0 %v890
  %1038 = vmatprep.subr.bf16.mxu0 0
  %1039 = vmatpush1.bf16.msra.mxu0 %v891
  %1040 = vmatprep.subr.bf16.mxu0 0
  %1041 = vmatpush1.bf16.msra.mxu0 %v892
  %1042 = vmatprep.mubr.f32.mxu0 %v511
  %1043 = vmatmul.mubr.f32.gmra.mrb[0].mxu0 %v510
  %v1044 = vpop.f32.mrb[0].mxu0
  %v1045 = vadd.f32 %v992, %v1044
  %v1046 = vpop.f32.mrb[0].mxu0
  %1047 = vmatprep.mubr.f32.mxu0 %v513
  %1048 = vmatmul.mubr.f32.gmra.mrb[0].mxu0 %v512
  %v1049 = vpop.f32.mrb[0].mxu0
  %v1050 = vadd.f32 %v997, %v1049
  %v1051 = vpop.f32.mrb[0].mxu0
  %1052 = vmatprep.mubr.f32.mxu0 %v515
  %1053 = vmatmul.mubr.f32.gmra.mrb[0].mxu0 %v514
  %v1054 = vpop.f32.mrb[0].mxu0
  %v1055 = vadd.f32 %v1002, %v1054
  %v1056 = vpop.f32.mrb[0].mxu0
  %1057 = vmatprep.mubr.f32.mxu0 %v517
  %1058 = vmatmul.mubr.f32.gmra.mrb[0].mxu0 %v516
  %v1059 = vpop.f32.mrb[0].mxu0
  %v1060 = vadd.f32 %v1007, %v1059
  %v1061 = vpop.f32.mrb[0].mxu0
  %1062 = vdwg.mxu0
  %1063 = vmatprep.subr.bf16.mxu0 0
  %1064 = vmatpush1.bf16.msra.mxu0 %v893
  %1065 = vmatprep.subr.bf16.mxu0 0
  %1066 = vmatpush1.bf16.msra.mxu0 %v894
  %1067 = vmatprep.subr.bf16.mxu0 0
  %1068 = vmatpush1.bf16.msra.mxu0 %v895
  %1069 = vmatprep.subr.bf16.mxu0 0
  %1070 = vmatpush1.bf16.msra.mxu0 %v896
  %1071 = vmatprep.subr.bf16.mxu0 0
  %1072 = vmatpush1.bf16.msra.mxu0 %v897
  %1073 = vmatprep.subr.bf16.mxu0 0
  %1074 = vmatpush1.bf16.msra.mxu0 %v898
  %1075 = vmatprep.subr.bf16.mxu0 0
  %1076 = vmatpush1.bf16.msra.mxu0 %v899
  %1077 = vmatprep.subr.bf16.mxu0 0
  %1078 = vmatpush1.bf16.msra.mxu0 %v900
  %1079 = vmatprep.subr.bf16.mxu0 0
  %1080 = vmatpush1.bf16.msra.mxu0 %v901
  %1081 = vmatprep.subr.bf16.mxu0 0
  %1082 = vmatpush1.bf16.msra.mxu0 %v902
  %1083 = vmatprep.subr.bf16.mxu0 0
  %1084 = vmatpush1.bf16.msra.mxu0 %v903
  %1085 = vmatprep.subr.bf16.mxu0 0
  %1086 = vmatpush1.bf16.msra.mxu0 %v904
  %1087 = vmatprep.subr.bf16.mxu0 0
  %1088 = vmatpush1.bf16.msra.mxu0 %v905
  %1089 = vmatprep.subr.bf16.mxu0 0
  %1090 = vmatpush1.bf16.msra.mxu0 %v906
  %1091 = vmatprep.subr.bf16.mxu0 0
  %1092 = vmatpush1.bf16.msra.mxu0 %v907
  %1093 = vmatprep.subr.bf16.mxu0 0
  %1094 = vmatpush1.bf16.msra.mxu0 %v908
  %1095 = vmatprep.mubr.f32.mxu0 %v559
  %1096 = vmatmul.mubr.f32.gmra.mrb[0].mxu0 %v558
  %v1097 = vpop.f32.mrb[0].mxu0
  %v1098 = vadd.f32 %v1045, %v1097
  %v1099 = vpop.f32.mrb[0].mxu0
  %1100 = vmatprep.mubr.f32.mxu0 %v561
  %1101 = vmatmul.mubr.f32.gmra.mrb[0].mxu0 %v560
  %v1102 = vpop.f32.mrb[0].mxu0
  %v1103 = vadd.f32 %v1050, %v1102
  %v1104 = vpop.f32.mrb[0].mxu0
  %1105 = vmatprep.mubr.f32.mxu0 %v563
  %1106 = vmatmul.mubr.f32.gmra.mrb[0].mxu0 %v562
  %v1107 = vpop.f32.mrb[0].mxu0
  %v1108 = vadd.f32 %v1055, %v1107
  %v1109 = vpop.f32.mrb[0].mxu0
  %1110 = vmatprep.mubr.f32.mxu0 %v565
  %1111 = vmatmul.mubr.f32.gmra.mrb[0].mxu0 %v564
  %v1112 = vpop.f32.mrb[0].mxu0
  %v1113 = vadd.f32 %v1060, %v1112
  %v1114 = vpop.f32.mrb[0].mxu0
  %1115 = vdwg.mxu0
  %1116 = vst.msk [vmem:[%s5] sm:$0xff] %vm185, %v1098
  %1117 = vst.msk [vmem:[%s5 + $0x8] sm:$0xff] %vm185, %v1103
  %1118 = vst.msk [vmem:[%s5 + $0x10] sm:$0xff] %vm185, %v1108
  %1119 = vst.msk [vmem:[%s5 + $0x18] sm:$0xff] %vm185, %v1113
  // Predicated region
  $region22: #{vanilla_hypernet_forward.1} parent=0 // pred_check
    _
  $region23: #{vanilla_hypernet_forward.1} parent=0 // pred_check_branch
    %1121 = sbr.rel (0) target = $region25
  $region24: #{vanilla_hypernet_forward.1} parent=0 // pred_region
    _
  $region25: #{vanilla_hypernet_forward.1} parent=0 // pred_fallthru
    _
  // Predicated region
  $region26: #{vanilla_hypernet_forward.1} parent=0 // pred_check
    _
  $region27: #{vanilla_hypernet_forward.1} parent=0 // pred_check_branch
    %1123 = sbr.rel (0) target = $region29
  $region28: #{vanilla_hypernet_forward.1} parent=0 // pred_region
    _
  $region29: #{vanilla_hypernet_forward.1} parent=0 // pred_fallthru
    _

</llo_original>
